<compile_context>
chip_gen: v6e
topology: v6e:2x2x1
jax: 0.10.0
libtpu: 0.0.40
codegen_flags: <defaults>
</compile_context>

<pallas_src>
import functools
import math

import jax
import jax.numpy as jnp
from jax.experimental import pallas as pl
from jax.experimental.pallas import tpu as pltpu


def _sdpa_kernel(q_ref, k_ref, v_ref, out_ref, attn_ref, log_attn_ref, *,
                 inv_temperature, scale_scores_in_f32):
    # Blocks: q (bt, tq, D), k (bt, Lk, D), v (bt, Lk, Dv).
    q = q_ref[...]
    k = k_ref[...]

    if not scale_scores_in_f32:
        # f32 inputs: scale the (tq, D) operand — fewer elements than (tq, Lk).
        q = q * inv_temperature

    # Contract on the D axis of both operands: K is consumed in stored layout
    # (no explicit k.T / XLU transpose); accumulate in f32 on the MXU.
    scores = jnp.einsum("bqd,bkd->bqk", q, k,
                        preferred_element_type=jnp.float32)

    if scale_scores_in_f32:
        # Low-precision inputs (e.g. bf16): scale the f32 scores so the scaling
        # does not introduce an extra low-precision rounding step.
        scores = scores * inv_temperature

    # Numerically stable softmax / log_softmax over the last axis (f32 math).
    m = jnp.max(scores, axis=-1, keepdims=True)
    shifted = scores - m
    e = jnp.exp(shifted)
    s = jnp.sum(e, axis=-1, keepdims=True)

    # Store log_attn right away (short live range). Down-cast attn exactly once
    # and reuse it for both the store and the second matmul.
    log_attn_ref[...] = (shifted - jnp.log(s)).astype(log_attn_ref.dtype)
    attn_lo = (e * pl.reciprocal(s, approx=False)).astype(attn_ref.dtype)
    attn_ref[...] = attn_lo

    # Dropout(p=0.1) is identity in eval mode (inference semantics).

    v = v_ref[...]
    out = jnp.einsum("bqk,bkd->bqd", attn_lo.astype(v.dtype), v,
                     preferred_element_type=jnp.float32)
    out_ref[...] = out.astype(out_ref.dtype)


def _vmem_capacity_bytes():
    """Physical VMEM of the attached chip; conservative (64 MiB, v7x) if unknown."""
    try:
        info = pltpu.get_tpu_info()
        cap = getattr(info, "vmem_capacity_bytes", None)
        if cap:
            return int(cap)
    except Exception:
        pass
    return 64 << 20


def _nbytes(shape, dtype):
    return math.prod(shape) * jnp.dtype(dtype).itemsize


def scaled_dot_product_attention(q, k, v, temperature):
    """q: [B, Lq, D], k: [B, Lk, D], v: [B, Lk, Dv] -> (output, attn, log_attn).

    attn / log_attn are emitted in the input dtype (torch parity). A fused
    consumer that only needs one of them should drop the other output — that
    halves the dominant HBM write traffic of this kernel.
    """
    B, Lq, D = q.shape
    Bk, Lk, Dk = k.shape
    Bv, Lkv, Dv = v.shape
    assert Dk == D and Bk == B and Bv == B and Lkv == Lk

    out_dtype = q.dtype

    # ---- chip-aware VMEM budget ---------------------------------------------
    vmem_cap = _vmem_capacity_bytes()
    vmem_budget = (vmem_cap * 3) // 4            # ~48 MiB v7x, ~96 MiB v5e/v6e
    target_rows = 512 if vmem_cap >= (96 << 20) else 256

    def footprint(bt, tq):
        # Double-buffered in/out blocks + live f32 softmax intermediates
        # (scores / shifted / e / attn-before-downcast ~ 4 x (bt, tq, Lk) f32).
        io = (_nbytes((bt, tq, D), q.dtype)
              + _nbytes((bt, Lk, D), k.dtype)
              + _nbytes((bt, Lk, Dv), v.dtype)
              + _nbytes((bt, tq, Dv), out_dtype)
              + 2 * _nbytes((bt, tq, Lk), out_dtype))
        f32_live = 4 * bt * tq * Lk * 4
        return 2 * io + f32_live

    # ---- tiling policy --------------------------------------------------------
    if Lq <= target_rows:
        # FEAT regime (tiny Lq): fold batches into one grid step so per-step
        # overhead and lane-sparse stores are amortized.
        tq = Lq
        bt = min(B, max(1, target_rows // max(Lq, 1)))
        while B % bt:                      # whole batches per block
            bt -= 1
        # Megacore: keep >= 2 grid steps along a parallel axis when the work is
        # large enough that the split beats the ~0.35us/step overhead (v7x 2 TCs).
        total_flops = 4 * B * Lq * Lk * max(D, Dv)
        if bt == B and B > 1 and total_flops > int(1e8):
            bt = (B + 1) // 2
            while B % bt:
                bt -= 1
    else:
        bt = 1
        tq = target_rows

    # Shrink the block until the f32-intermediate-aware footprint fits the
    # budget (keeps v7x's 64 MiB VMEM spill-free as Lk grows).
    while footprint(bt, tq) > vmem_budget:
        if bt > 1:
            nbt = bt - 1
            while nbt > 1 and B % nbt:
                nbt -= 1
            bt = nbt
        elif tq > 8:
            tq = max(8, (tq // 2) // 8 * 8)
        else:
            # TODO(synk): flash-style two-pass inner 'arbitrary' Lk axis needed
            # for Lk this large; see module header.
            break

    grid = (B // bt, pl.cdiv(Lq, tq))
    vmem_limit = int(min(vmem_budget,
                         max(footprint(bt, tq) + (4 << 20), 32 << 20)))

    kernel = functools.partial(
        _sdpa_kernel,
        inv_temperature=1.0 / float(temperature),
        scale_scores_in_f32=(jnp.dtype(q.dtype) != jnp.dtype(jnp.float32)),
    )

    out_shapes = (
        jax.ShapeDtypeStruct((B, Lq, Dv), out_dtype),   # output
        jax.ShapeDtypeStruct((B, Lq, Lk), out_dtype),   # attn
        jax.ShapeDtypeStruct((B, Lq, Lk), out_dtype),   # log_attn
    )

    return pl.pallas_call(
        kernel,
        out_shape=out_shapes,
        grid_spec=pltpu.PrefetchScalarGridSpec(
            num_scalar_prefetch=0,
            grid=grid,
            in_specs=[
                pl.BlockSpec((bt, tq, D), lambda b, i: (b, i, 0)),
                pl.BlockSpec((bt, Lk, D), lambda b, i: (b, 0, 0)),   # resident over i
                pl.BlockSpec((bt, Lk, Dv), lambda b, i: (b, 0, 0)),  # resident over i
            ],
            out_specs=[
                pl.BlockSpec((bt, tq, Dv), lambda b, i: (b, i, 0)),
                pl.BlockSpec((bt, tq, Lk), lambda b, i: (b, i, 0)),
                pl.BlockSpec((bt, tq, Lk), lambda b, i: (b, i, 0)),
            ],
        ),
        compiler_params=pltpu.CompilerParams(
            dimension_semantics=("parallel", "parallel"),
            vmem_limit_bytes=vmem_limit),
    )(q, k, v)


def _reference(q, k, v, temperature):
    scores = jnp.einsum("bqd,bkd->bqk", q, k) / temperature
    log_attn = jax.nn.log_softmax(scores, axis=2)
    attn = jax.nn.softmax(scores, axis=2)
    out = jnp.einsum("bqk,bkd->bqd", attn, v)
    return out, attn, log_attn


def _check(q, k, v, temperature, atol, rtol, name):
    out, attn, log_attn = scaled_dot_product_attention(q, k, v, temperature)
    jax.block_until_ready((out, attn, log_attn))
    qf, kf, vf = (x.astype(jnp.float32) for x in (q, k, v))
    ro, ra, rl = _reference(qf, kf, vf, temperature)
    for got, want, what in ((out, ro, "output"), (attn, ra, "attn"),
                            (log_attn, rl, "log_attn")):
        assert jnp.allclose(got.astype(jnp.float32), want, atol=atol, rtol=rtol), \
            f"{name}:{what} mismatch"


if __name__ == "__main__":
    key = jax.random.PRNGKey(0)
    k1, k2, k3, k4, k5, k6 = jax.random.split(key, 6)

    # 1) FEAT regime: tiny Lq/Lk, batches folded into a single grid step (f32).
    B, Lq, Lk, D, Dv = 2, 8, 8, 32, 32
    temperature = float(math.sqrt(D))
    q = jax.random.normal(k1, (B, Lq, D), dtype=jnp.float32)
    k = jax.random.normal(k2, (B, Lk, D), dtype=jnp.float32)
    v = jax.random.normal(k3, (B, Lk, Dv), dtype=jnp.float32)
    _check(q, k, v, temperature, atol=1e-5, rtol=1e-5, name="feat_f32")

    # 2) Lq-tiled path: multi-step grid with a partial final q tile (f32).
    B2, Lq2, Lk2, D2 = 2, 640, 64, 64
    q2 = jax.random.normal(k4, (B2, Lq2, D2), dtype=jnp.float32)
    k2_ = jax.random.normal(k5, (B2, Lk2, D2), dtype=jnp.float32)
    v2 = jax.random.normal(k6, (B2, Lk2, D2), dtype=jnp.float32)
    _check(q2, k2_, v2, float(math.sqrt(D2)), atol=1e-4, rtol=1e-4,
           name="tiled_f32")

    # 3) bf16 inputs: scores scaled in f32; attn/log_attn emitted in bf16.
    _check(q.astype(jnp.bfloat16), k.astype(jnp.bfloat16),
           v.astype(jnp.bfloat16), temperature, atol=1e-1, rtol=1e-1,
           name="feat_bf16")

    print("KERNEL_OK")
</pallas_src>

<mosaic_0001>
module attributes {stable_mosaic.version = 11 : i64} {
  func.func @_sdpa_kernel(%arg0: i32, %arg1: i32, %arg2: memref<2x8x32xf32, #tpu.memory_space<vmem>>, %arg3: memref<2x8x32xf32, #tpu.memory_space<vmem>>, %arg4: memref<2x8x32xf32, #tpu.memory_space<vmem>>, %arg5: memref<2x8x32xf32, #tpu.memory_space<vmem>>, %arg6: memref<2x8x8xf32, #tpu.memory_space<vmem>>, %arg7: memref<2x8x8xf32, #tpu.memory_space<vmem>>) attributes {dimension_semantics = [#tpu.dimension_semantics<parallel>, #tpu.dimension_semantics<parallel>], iteration_bounds = array<i64: 1, 1>, scalar_prefetch = 0 : i64, scratch_operands = 0 : i64, tpu.core_type = #tpu.core_type<tc>, window_params = [{transform_indices = @transform_0, window_bounds = array<i64: 2, 8, 32>}, {transform_indices = @transform_1, window_bounds = array<i64: 2, 8, 32>}, {transform_indices = @transform_2, window_bounds = array<i64: 2, 8, 32>}, {transform_indices = @transform_3, window_bounds = array<i64: 2, 8, 32>}, {transform_indices = @transform_4, window_bounds = array<i64: 2, 8, 8>}, {transform_indices = @transform_5, window_bounds = array<i64: 2, 8, 8>}]} {
    %c0 = arith.constant 0 : index
    %c0_0 = arith.constant 0 : index
    %c0_1 = arith.constant 0 : index
    %0 = vector.load %arg2[%c0, %c0_0, %c0_1] : memref<2x8x32xf32, #tpu.memory_space<vmem>>, vector<2x8x32xf32>
    %c0_2 = arith.constant 0 : index
    %c0_3 = arith.constant 0 : index
    %c0_4 = arith.constant 0 : index
    %1 = vector.load %arg3[%c0_2, %c0_3, %c0_4] : memref<2x8x32xf32, #tpu.memory_space<vmem>>, vector<2x8x32xf32>
    %cst = arith.constant 0.176776692 : f32
    %2 = vector.broadcast %cst : f32 to vector<2x8x32xf32>
    %3 = arith.mulf %0, %2 : vector<2x8x32xf32>
    "tpu.trace_start"() <{level = 10 : i32, message = "bqd,bkd->bqk"}> : () -> ()
    %cst_5 = arith.constant dense<0.000000e+00> : vector<2x8x8xf32>
    %4 = tpu.matmul %3, %1, %cst_5 {dimension_numbers = #tpu.dot_dimension_numbers<[2], [2], [1], [1], [0, 0, 0, 1, 1, 1], [0], [0]>} : vector<2x8x32xf32>, vector<2x8x32xf32>, vector<2x8x8xf32> -> vector<2x8x8xf32>
    "tpu.trace_stop"() : () -> ()
    %cst_6 = arith.constant dense<0xFF800000> : vector<2x8xf32>
    %5 = vector.multi_reduction <maximumf>, %4, %cst_6 [2] : vector<2x8x8xf32> to vector<2x8xf32>
    %6 = vector.shape_cast %5 : vector<2x8xf32> to vector<2x8x1xf32>
    %7 = vector.broadcast %6 : vector<2x8x1xf32> to vector<2x8x8xf32>
    %8 = arith.subf %4, %7 : vector<2x8x8xf32>
    %9 = math.exp %8 : vector<2x8x8xf32>
    %cst_7 = arith.constant dense<0.000000e+00> : vector<2x8xf32>
    %10 = vector.multi_reduction <add>, %9, %cst_7 [2] : vector<2x8x8xf32> to vector<2x8xf32>
    %11 = vector.shape_cast %10 : vector<2x8xf32> to vector<2x8x1xf32>
    %12 = math.log %11 : vector<2x8x1xf32>
    %13 = vector.broadcast %12 : vector<2x8x1xf32> to vector<2x8x8xf32>
    %14 = arith.subf %8, %13 : vector<2x8x8xf32>
    %c0_8 = arith.constant 0 : index
    %c0_9 = arith.constant 0 : index
    %c0_10 = arith.constant 0 : index
    %15 = vector.load %arg7[%c0_8, %c0_9, %c0_10] : memref<2x8x8xf32, #tpu.memory_space<vmem>>, vector<2x8x8xf32>
    tpu.vector_store %arg7[%c0_8, %c0_9, %c0_10], %14 {strides = array<i32>} : memref<2x8x8xf32, #tpu.memory_space<vmem>>, vector<2x8x8xf32>,
    %16 = tpu.reciprocal %11 : vector<2x8x1xf32> -> vector<2x8x1xf32>
    %17 = vector.broadcast %16 : vector<2x8x1xf32> to vector<2x8x8xf32>
    %18 = arith.mulf %9, %17 : vector<2x8x8xf32>
    %c0_11 = arith.constant 0 : index
    %c0_12 = arith.constant 0 : index
    %c0_13 = arith.constant 0 : index
    %19 = vector.load %arg6[%c0_11, %c0_12, %c0_13] : memref<2x8x8xf32, #tpu.memory_space<vmem>>, vector<2x8x8xf32>
    tpu.vector_store %arg6[%c0_11, %c0_12, %c0_13], %18 {strides = array<i32>} : memref<2x8x8xf32, #tpu.memory_space<vmem>>, vector<2x8x8xf32>,
    %c0_14 = arith.constant 0 : index
    %c0_15 = arith.constant 0 : index
    %c0_16 = arith.constant 0 : index
    %20 = vector.load %arg4[%c0_14, %c0_15, %c0_16] : memref<2x8x32xf32, #tpu.memory_space<vmem>>, vector<2x8x32xf32>
    "tpu.trace_start"() <{level = 10 : i32, message = "bqk,bkd->bqd"}> : () -> ()
    %cst_17 = arith.constant dense<0.000000e+00> : vector<2x8x32xf32>
    %21 = tpu.matmul %18, %20, %cst_17 {dimension_numbers = #tpu.dot_dimension_numbers<[2], [1], [1], [2], [0, 0, 0, 1, 1, 2], [0], [0]>} : vector<2x8x8xf32>, vector<2x8x32xf32>, vector<2x8x32xf32> -> vector<2x8x32xf32>
    "tpu.trace_stop"() : () -> ()
    %c0_18 = arith.constant 0 : index
    %c0_19 = arith.constant 0 : index
    %c0_20 = arith.constant 0 : index
    %22 = vector.load %arg5[%c0_18, %c0_19, %c0_20] : memref<2x8x32xf32, #tpu.memory_space<vmem>>, vector<2x8x32xf32>
    tpu.vector_store %arg5[%c0_18, %c0_19, %c0_20], %21 {strides = array<i32>} : memref<2x8x32xf32, #tpu.memory_space<vmem>>, vector<2x8x32xf32>,
    return
  }
  func.func @transform_0(%arg0: i32, %arg1: i32) -> (i32, i32, i32) {
    %c0_i32 = arith.constant 0 : i32
    %c0_i32_0 = arith.constant 0 : i32
    return %arg0, %arg1, %c0_i32 : i32, i32, i32
  }
  func.func @transform_1(%arg0: i32, %arg1: i32) -> (i32, i32, i32) {
    %c0_i32 = arith.constant 0 : i32
    %c0_i32_0 = arith.constant 0 : i32
    %c0_i32_1 = arith.constant 0 : i32
    return %arg0, %c0_i32, %c0_i32_0 : i32, i32, i32
  }
  func.func @transform_2(%arg0: i32, %arg1: i32) -> (i32, i32, i32) {
    %c0_i32 = arith.constant 0 : i32
    %c0_i32_0 = arith.constant 0 : i32
    %c0_i32_1 = arith.constant 0 : i32
    return %arg0, %c0_i32, %c0_i32_0 : i32, i32, i32
  }
  func.func @transform_3(%arg0: i32, %arg1: i32) -> (i32, i32, i32) {
    %c0_i32 = arith.constant 0 : i32
    %c0_i32_0 = arith.constant 0 : i32
    return %arg0, %arg1, %c0_i32 : i32, i32, i32
  }
  func.func @transform_4(%arg0: i32, %arg1: i32) -> (i32, i32, i32) {
    %c0_i32 = arith.constant 0 : i32
    %c0_i32_0 = arith.constant 0 : i32
    return %arg0, %arg1, %c0_i32 : i32, i32, i32
  }
  func.func @transform_5(%arg0: i32, %arg1: i32) -> (i32, i32, i32) {
    %c0_i32 = arith.constant 0 : i32
    %c0_i32_0 = arith.constant 0 : i32
    return %arg0, %arg1, %c0_i32 : i32, i32, i32
  }
}

</mosaic_0001>

<llo_original>
// kernel: tpu_custom_call.1
$region0: #{tpu_custom_call.1}
  #allocation0 [shape = 'u32[]', space=smem, size = 0x4, offset = 0x4, fixed_abs, tag = 'smem constant byte address 0x4 - core index']
  #allocation1 [shape = 'u32[144,128]{1,0:T(1,128)}', space=vmem, size = 0x12000, scoped, tag = 'internal scratch']
  %s0 = inlined_call_operand.hbm [shape: f32[2,8,32], index: 0, kind: input, shape index: {}]
  %s1 = inlined_call_operand.hbm [shape: f32[2,8,32], index: 1, kind: input, shape index: {}]
  %s2 = inlined_call_operand.hbm [shape: f32[2,8,32], index: 2, kind: input, shape index: {}]
  %s3 = inlined_call_operand.hbm [shape: f32[2,8,32], index: 3, kind: output, shape index: {0}]
  %s4 = inlined_call_operand.hbm [shape: f32[2,8,8], index: 4, kind: output, shape index: {1}]
  %s5 = inlined_call_operand.hbm [shape: f32[2,8,8], index: 5, kind: output, shape index: {2}]
  %6 = xla_tuple %s3, %s4, %s5
  %s7 = sld [smem:[#allocation0]]
  $region50: #{tpu_custom_call.1} parent=0
    _
  %s9 = ssub.s32 1, %s7
  %s10 = scalar_select 0, %s9, %s7
  $region1: #{tpu_custom_call.1} parent=0
    #allocation2 [shape = 'u8[8192]{0}', space=vmem, size = 0x2000, scoped, tag = 'input window, operand 0, single buffered']
    #allocation3 [shape = 's32[1]{0}', space=sflag, size = 0x4, scoped, tag = 'scoped memory for tpu_custom_call.1']
    #allocation4 [shape = 's32[1]{0}', space=sflag, size = 0x4, scoped, tag = 'scoped memory for tpu_custom_call.1']
    #allocation5 [shape = 'u8[8192]{0}', space=vmem, size = 0x2000, scoped, tag = 'input window, operand 1, single buffered']
    #allocation6 [shape = 's32[1]{0}', space=sflag, size = 0x4, scoped, tag = 'scoped memory for tpu_custom_call.1']
    #allocation7 [shape = 'u8[8192]{0}', space=vmem, size = 0x2000, scoped, tag = 'input window, operand 2, single buffered']
    #allocation8 [shape = 'u8[8192]{0}', space=vmem, size = 0x2000, scoped, tag = 'output window, operand 0, single buffered']
    #allocation9 [shape = 'u8[8192]{0}', space=vmem, size = 0x2000, scoped, tag = 'output window, operand 1, single buffered']
    #allocation10 [shape = 's32[1]{0}', space=sflag, size = 0x4, scoped, tag = 'scoped memory for tpu_custom_call.1']
    #allocation11 [shape = 'u8[8192]{0}', space=vmem, size = 0x2000, scoped, tag = 'output window, operand 2, single buffered']
    %11 = vsyncpa [#allocation3], 0
    %12 = vsyncpa [#allocation6], 0
    %13 = vsyncpa [#allocation4], 0
    %14 = vsyncpa [#allocation10], 0
    // Predicated region
    $region2: #{tpu_custom_call.1} parent=1 // pred_check
      _
    $region3: #{tpu_custom_call.1} parent=1 // pred_check_branch
      %16 = sbr.rel (0) target = $region5
    $region4: #{tpu_custom_call.1} parent=1 // pred_region
      %s18 = ssub.s32 256, 256
      %19 = vsyncadd [#allocation3], %s18
      %s20 = sshll.u32 [#allocation2], 4
      %s21 = int_to_ptr.vmem [resolvable:$true] %s20
      %26 = dma.hbm_to_vmem [thread:$0]  %s0, 256, %s21, [#allocation3], 128, 128, 8
    $region5: #{tpu_custom_call.1} parent=1 // pred_fallthru
      _
    // Predicated region
    $region6: #{tpu_custom_call.1} parent=1 // pred_check
      _
    $region7: #{tpu_custom_call.1} parent=1 // pred_check_branch
      %28 = sbr.rel (0) target = $region9
    $region8: #{tpu_custom_call.1} parent=1 // pred_region
      %s30 = ssub.s32 256, 256
      %31 = vsyncadd [#allocation6], %s30
      %s32 = sshll.u32 [#allocation5], 4
      %s33 = int_to_ptr.vmem [resolvable:$true] %s32
      %38 = dma.hbm_to_vmem [thread:$0]  %s1, 256, %s33, [#allocation6], 128, 128, 8
    $region9: #{tpu_custom_call.1} parent=1 // pred_fallthru
      _
    // Predicated region
    $region10: #{tpu_custom_call.1} parent=1 // pred_check
      _
    $region11: #{tpu_custom_call.1} parent=1 // pred_check_branch
      %40 = sbr.rel (0) target = $region13
    $region12: #{tpu_custom_call.1} parent=1 // pred_region
      %s42 = ssub.s32 256, 256
      %43 = vsyncadd [#allocation6], %s42
      %s44 = sshll.u32 [#allocation7], 4
      %s45 = int_to_ptr.vmem [resolvable:$true] %s44
      %50 = dma.hbm_to_vmem [thread:$0]  %s2, 256, %s45, [#allocation6], 128, 128, 8
    $region13: #{tpu_custom_call.1} parent=1 // pred_fallthru
      _
    // Predicated region
    $region14: #{tpu_custom_call.1} parent=1 // pred_check
      _
    $region15: #{tpu_custom_call.1} parent=1 // pred_check_branch
      %52 = sbr.rel (0) target = $region17
    $region16: #{tpu_custom_call.1} parent=1 // pred_region
      %53 = dma.done [#allocation3], 256
    $region17: #{tpu_custom_call.1} parent=1 // pred_fallthru
      _
    // Predicated region
    $region18: #{tpu_custom_call.1} parent=1 // pred_check
      _
    $region19: #{tpu_custom_call.1} parent=1 // pred_check_branch
      %55 = sbr.rel (0) target = $region21
    $region20: #{tpu_custom_call.1} parent=1 // pred_region
      %56 = dma.done [#allocation6], 256
    $region21: #{tpu_custom_call.1} parent=1 // pred_fallthru
      _
    // Predicated region
    $region22: #{tpu_custom_call.1} parent=1 // pred_check
      _
    $region23: #{tpu_custom_call.1} parent=1 // pred_check_branch
      %58 = sbr.rel (0) target = $region25
    $region24: #{tpu_custom_call.1} parent=1 // pred_region
      %59 = dma.done [#allocation6], 256
    $region25: #{tpu_custom_call.1} parent=1 // pred_fallthru
      _
    %v60 = vld [vmem:[#allocation2] sm:$0xff]
    %v61 = vld [vmem:[#allocation2 + $0x8] sm:$0xff]
    %v62 = vld [vmem:[#allocation5] sm:$0xff]
    %v63 = vld [vmem:[#allocation5 + $0x8] sm:$0xff]
    %v64 = vmul.f32 %v60, 0.17677669
    %v65 = vmul.f32 %v61, 0.17677669
    %vm66 = vcmask 261120
    %v68 = vsel %vm66, %v64, 0
    %v71 = vsel %vm66, %v62, 0
    %73 = vmatprep.subr.mxu0 0.0
    %74 = vmatpush1.xpose.msra.mxu0 0.0
    %75 = vmatprep.subr.mxu0 0.0
    %76 = vmatpush1.xpose.msra.mxu0 0.0
    %77 = vmatprep.subr.mxu0 0.0
    %78 = vmatpush1.xpose.msra.mxu0 0.0
    %79 = vmatprep.subr.mxu0 0.0
    %80 = vmatpush1.xpose.msra.mxu0 0.0
    %81 = vmatprep.subr.mxu0 0.0
    %82 = vmatpush1.xpose.msra.mxu0 0.0
    %83 = vmatprep.subr.mxu0 0.0
    %84 = vmatpush1.xpose.msra.mxu0 0.0
    %85 = vmatprep.subr.mxu0 0.0
    %86 = vmatpush1.xpose.msra.mxu0 0.0
    %87 = vmatprep.subr.mxu0 0.0
    %88 = vmatpush1.xpose.msra.mxu0 0.0
    %89 = vmatprep.subr.mxu0 0.0
    %90 = vmatpush1.xpose.msra.mxu0 0.0
    %91 = vmatprep.subr.mxu0 0.0
    %92 = vmatpush1.xpose.msra.mxu0 0.0
    %93 = vmatprep.subr.mxu0 0.0
    %94 = vmatpush1.xpose.msra.mxu0 0.0
    %95 = vmatprep.subr.mxu0 0.0
    %96 = vmatpush1.xpose.msra.mxu0 0.0
    %97 = vmatprep.subr.mxu0 0.0
    %98 = vmatpush1.xpose.msra.mxu0 0.0
    %99 = vmatprep.subr.mxu0 0.0
    %100 = vmatpush1.xpose.msra.mxu0 0.0
    %101 = vmatprep.subr.mxu0 0.0
    %102 = vmatpush1.xpose.msra.mxu0 0.0
    %103 = vmatprep.subr.mxu0 0.0
    %104 = vmatpush1.xpose.msra.mxu0 %v71
    %105 = vmatprep.subr.mxu0 0.0
    %106 = vmatpush2.xpose.msra.mxu0 0.0
    %107 = vmatprep.subr.mxu0 0.0
    %108 = vmatpush2.xpose.msra.mxu0 0.0
    %109 = vmatprep.subr.mxu0 0.0
    %110 = vmatpush2.xpose.msra.mxu0 0.0
    %111 = vmatprep.subr.mxu0 0.0
    %112 = vmatpush2.xpose.msra.mxu0 0.0
    %113 = vmatprep.subr.mxu0 0.0
    %114 = vmatpush2.xpose.msra.mxu0 0.0
    %115 = vmatprep.subr.mxu0 0.0
    %116 = vmatpush2.xpose.msra.mxu0 0.0
    %117 = vmatprep.subr.mxu0 0.0
    %118 = vmatpush2.xpose.msra.mxu0 0.0
    %119 = vmatprep.subr.mxu0 0.0
    %120 = vmatpush2.xpose.msra.mxu0 0.0
    %121 = vmatprep.subr.mxu0 0.0
    %122 = vmatpush2.xpose.msra.mxu0 0.0
    %123 = vmatprep.subr.mxu0 0.0
    %124 = vmatpush2.xpose.msra.mxu0 0.0
    %125 = vmatprep.subr.mxu0 0.0
    %126 = vmatpush2.xpose.msra.mxu0 0.0
    %127 = vmatprep.subr.mxu0 0.0
    %128 = vmatpush2.xpose.msra.mxu0 0.0
    %129 = vmatprep.subr.mxu0 0.0
    %130 = vmatpush2.xpose.msra.mxu0 0.0
    %131 = vmatprep.subr.mxu0 0.0
    %132 = vmatpush2.xpose.msra.mxu0 0.0
    %133 = vmatprep.subr.mxu0 0.0
    %134 = vmatpush2.xpose.msra.mxu0 0.0
    %135 = vmatprep.subr.mxu0 0.0
    %136 = vmatpush2.xpose.msra.mxu0 0.0
    %137 = vmatprep.mubr.f32.mxu0 0.0
    %138 = vmatmul.mubr.f32.gmra.mxu0 %v68
    %v139 = vpop.f32.mrf.mxu0
    %v140 = vadd.f32 0.0, %v139
    %v141 = vpop.f32.mrf.mxu0
    %142 = vdwg.mxu0
    %v144 = vsel %vm66, %v65, 0
    %v147 = vsel %vm66, %v63, 0
    %149 = vmatprep.subr.mxu0 0.0
    %150 = vmatpush1.xpose.msra.mxu0 0.0
    %151 = vmatprep.subr.mxu0 0.0
    %152 = vmatpush1.xpose.msra.mxu0 0.0
    %153 = vmatprep.subr.mxu0 0.0
    %154 = vmatpush1.xpose.msra.mxu0 0.0
    %155 = vmatprep.subr.mxu0 0.0
    %156 = vmatpush1.xpose.msra.mxu0 0.0
    %157 = vmatprep.subr.mxu0 0.0
    %158 = vmatpush1.xpose.msra.mxu0 0.0
    %159 = vmatprep.subr.mxu0 0.0
    %160 = vmatpush1.xpose.msra.mxu0 0.0
    %161 = vmatprep.subr.mxu0 0.0
    %162 = vmatpush1.xpose.msra.mxu0 0.0
    %163 = vmatprep.subr.mxu0 0.0
    %164 = vmatpush1.xpose.msra.mxu0 0.0
    %165 = vmatprep.subr.mxu0 0.0
    %166 = vmatpush1.xpose.msra.mxu0 0.0
    %167 = vmatprep.subr.mxu0 0.0
    %168 = vmatpush1.xpose.msra.mxu0 0.0
    %169 = vmatprep.subr.mxu0 0.0
    %170 = vmatpush1.xpose.msra.mxu0 0.0
    %171 = vmatprep.subr.mxu0 0.0
    %172 = vmatpush1.xpose.msra.mxu0 0.0
    %173 = vmatprep.subr.mxu0 0.0
    %174 = vmatpush1.xpose.msra.mxu0 0.0
    %175 = vmatprep.subr.mxu0 0.0
    %176 = vmatpush1.xpose.msra.mxu0 0.0
    %177 = vmatprep.subr.mxu0 0.0
    %178 = vmatpush1.xpose.msra.mxu0 0.0
    %179 = vmatprep.subr.mxu0 0.0
    %180 = vmatpush1.xpose.msra.mxu0 %v147
    %181 = vmatprep.subr.mxu0 0.0
    %182 = vmatpush2.xpose.msra.mxu0 0.0
    %183 = vmatprep.subr.mxu0 0.0
    %184 = vmatpush2.xpose.msra.mxu0 0.0
    %185 = vmatprep.subr.mxu0 0.0
    %186 = vmatpush2.xpose.msra.mxu0 0.0
    %187 = vmatprep.subr.mxu0 0.0
    %188 = vmatpush2.xpose.msra.mxu0 0.0
    %189 = vmatprep.subr.mxu0 0.0
    %190 = vmatpush2.xpose.msra.mxu0 0.0
    %191 = vmatprep.subr.mxu0 0.0
    %192 = vmatpush2.xpose.msra.mxu0 0.0
    %193 = vmatprep.subr.mxu0 0.0
    %194 = vmatpush2.xpose.msra.mxu0 0.0
    %195 = vmatprep.subr.mxu0 0.0
    %196 = vmatpush2.xpose.msra.mxu0 0.0
    %197 = vmatprep.subr.mxu0 0.0
    %198 = vmatpush2.xpose.msra.mxu0 0.0
    %199 = vmatprep.subr.mxu0 0.0
    %200 = vmatpush2.xpose.msra.mxu0 0.0
    %201 = vmatprep.subr.mxu0 0.0
    %202 = vmatpush2.xpose.msra.mxu0 0.0
    %203 = vmatprep.subr.mxu0 0.0
    %204 = vmatpush2.xpose.msra.mxu0 0.0
    %205 = vmatprep.subr.mxu0 0.0
    %206 = vmatpush2.xpose.msra.mxu0 0.0
    %207 = vmatprep.subr.mxu0 0.0
    %208 = vmatpush2.xpose.msra.mxu0 0.0
    %209 = vmatprep.subr.mxu0 0.0
    %210 = vmatpush2.xpose.msra.mxu0 0.0
    %211 = vmatprep.subr.mxu0 0.0
    %212 = vmatpush2.xpose.msra.mxu0 0.0
    %213 = vmatprep.mubr.f32.mxu0 0.0
    %214 = vmatmul.mubr.f32.gmra.mxu0 %v144
    %v215 = vpop.f32.mrf.mxu0
    %v216 = vadd.f32 0.0, %v215
    %v217 = vpop.f32.mrf.mxu0
    %218 = vdwg.mxu0
    %vm219 = vcmask 64512
    %v220 = vsel %vm219, %v140, -inf
    %221 = vmax.xlane.f32.xlu0 %v220
    %v222 = vpop.xlane.xlu0 %221
    %v223 = vsel %vm219, %v216, -inf
    %224 = vmax.xlane.f32.xlu0 %v223
    %v225 = vpop.xlane.xlu0 %224
    %v226 = vsub.f32 %v140, %v222
    %v227 = vsub.f32 %v216, %v225
    %v228 = vmul.f32 %v226, 1.442695
    %v229 = vpow.pop %v228
    %v230 = vmul.f32 %v227, 1.442695
    %v231 = vpow.pop %v230
    %v232 = vsel %vm219, %v229, 0.0
    %233 = vadd.xlane.f32.xlu0 %v232
    %v234 = vpop.xlane.xlu0 %233
    %v235 = vsel %vm219, %v231, 0.0
    %236 = vadd.xlane.f32.xlu0 %v235
    %v237 = vpop.xlane.xlu0 %236
    %v238 = vlog2.pop %v234
    %v239 = vmul.f32 %v238, 0.6931472
    %v240 = vlog2.pop %v237
    %v241 = vmul.f32 %v240, 0.6931472
    %v242 = vsub.f32 %v226, %v239
    %v243 = vsub.f32 %v227, %v241
    %244 = vst.msk [vmem:[#allocation11] sm:$0xff] %vm219, %v242
    %245 = vst.msk [vmem:[#allocation11 + $0x8] sm:$0xff] %vm219, %v243
    %v246 = vrcp.pop %v234
    %v247 = vrcp.pop %v237
    %v248 = vmul.f32 %v229, %v246
    %v249 = vmul.f32 %v231, %v247
    %250 = vst.msk [vmem:[#allocation9] sm:$0xff] %vm219, %v248
    %251 = vst.msk [vmem:[#allocation9 + $0x8] sm:$0xff] %vm219, %v249
    %v252 = vld [vmem:[#allocation7] sm:$0xff]
    %v253 = vld [vmem:[#allocation7 + $0x8] sm:$0xff]
    %v255 = vsel %vm219, %v248, 0
    %257 = vmatprep.subr.mxu0 0.0
    %258 = vmatpush1.msra.mxu0 0.0
    %259 = vmatprep.subr.mxu0 0.0
    %260 = vmatpush1.msra.mxu0 0.0
    %261 = vmatprep.subr.mxu0 0.0
    %262 = vmatpush1.msra.mxu0 0.0
    %263 = vmatprep.subr.mxu0 0.0
    %264 = vmatpush1.msra.mxu0 0.0
    %265 = vmatprep.subr.mxu0 0.0
    %266 = vmatpush1.msra.mxu0 0.0
    %267 = vmatprep.subr.mxu0 0.0
    %268 = vmatpush1.msra.mxu0 0.0
    %269 = vmatprep.subr.mxu0 0.0
    %270 = vmatpush1.msra.mxu0 0.0
    %271 = vmatprep.subr.mxu0 0.0
    %272 = vmatpush1.msra.mxu0 0.0
    %273 = vmatprep.subr.mxu0 0.0
    %274 = vmatpush1.msra.mxu0 0.0
    %275 = vmatprep.subr.mxu0 0.0
    %276 = vmatpush1.msra.mxu0 0.0
    %277 = vmatprep.subr.mxu0 0.0
    %278 = vmatpush1.msra.mxu0 0.0
    %279 = vmatprep.subr.mxu0 0.0
    %280 = vmatpush1.msra.mxu0 0.0
    %281 = vmatprep.subr.mxu0 0.0
    %282 = vmatpush1.msra.mxu0 0.0
    %283 = vmatprep.subr.mxu0 0.0
    %284 = vmatpush1.msra.mxu0 0.0
    %285 = vmatprep.subr.mxu0 0.0
    %286 = vmatpush1.msra.mxu0 0.0
    %287 = vmatprep.subr.mxu0 0.0
    %288 = vmatpush1.msra.mxu0 %v252
    %289 = vmatprep.subr.mxu0 0.0
    %290 = vmatpush2.msra.mxu0 0.0
    %291 = vmatprep.subr.mxu0 0.0
    %292 = vmatpush2.msra.mxu0 0.0
    %293 = vmatprep.subr.mxu0 0.0
    %294 = vmatpush2.msra.mxu0 0.0
    %295 = vmatprep.subr.mxu0 0.0
    %296 = vmatpush2.msra.mxu0 0.0
    %297 = vmatprep.subr.mxu0 0.0
    %298 = vmatpush2.msra.mxu0 0.0
    %299 = vmatprep.subr.mxu0 0.0
    %300 = vmatpush2.msra.mxu0 0.0
    %301 = vmatprep.subr.mxu0 0.0
    %302 = vmatpush2.msra.mxu0 0.0
    %303 = vmatprep.subr.mxu0 0.0
    %304 = vmatpush2.msra.mxu0 0.0
    %305 = vmatprep.subr.mxu0 0.0
    %306 = vmatpush2.msra.mxu0 0.0
    %307 = vmatprep.subr.mxu0 0.0
    %308 = vmatpush2.msra.mxu0 0.0
    %309 = vmatprep.subr.mxu0 0.0
    %310 = vmatpush2.msra.mxu0 0.0
    %311 = vmatprep.subr.mxu0 0.0
    %312 = vmatpush2.msra.mxu0 0.0
    %313 = vmatprep.subr.mxu0 0.0
    %314 = vmatpush2.msra.mxu0 0.0
    %315 = vmatprep.subr.mxu0 0.0
    %316 = vmatpush2.msra.mxu0 0.0
    %317 = vmatprep.subr.mxu0 0.0
    %318 = vmatpush2.msra.mxu0 0.0
    %319 = vmatprep.subr.mxu0 0.0
    %320 = vmatpush2.msra.mxu0 0.0
    %321 = vmatprep.mubr.f32.mxu0 0.0
    %322 = vmatmul.mubr.f32.gmra.mxu0 %v255
    %v323 = vpop.f32.mrf.mxu0
    %v324 = vadd.f32 0.0, %v323
    %v325 = vpop.f32.mrf.mxu0
    %326 = vdwg.mxu0
    %v328 = vsel %vm219, %v249, 0
    %330 = vmatprep.subr.mxu0 0.0
    %331 = vmatpush1.msra.mxu0 0.0
    %332 = vmatprep.subr.mxu0 0.0
    %333 = vmatpush1.msra.mxu0 0.0
    %334 = vmatprep.subr.mxu0 0.0
    %335 = vmatpush1.msra.mxu0 0.0
    %336 = vmatprep.subr.mxu0 0.0
    %337 = vmatpush1.msra.mxu0 0.0
    %338 = vmatprep.subr.mxu0 0.0
    %339 = vmatpush1.msra.mxu0 0.0
    %340 = vmatprep.subr.mxu0 0.0
    %341 = vmatpush1.msra.mxu0 0.0
    %342 = vmatprep.subr.mxu0 0.0
    %343 = vmatpush1.msra.mxu0 0.0
    %344 = vmatprep.subr.mxu0 0.0
    %345 = vmatpush1.msra.mxu0 0.0
    %346 = vmatprep.subr.mxu0 0.0
    %347 = vmatpush1.msra.mxu0 0.0
    %348 = vmatprep.subr.mxu0 0.0
    %349 = vmatpush1.msra.mxu0 0.0
    %350 = vmatprep.subr.mxu0 0.0
    %351 = vmatpush1.msra.mxu0 0.0
    %352 = vmatprep.subr.mxu0 0.0
    %353 = vmatpush1.msra.mxu0 0.0
    %354 = vmatprep.subr.mxu0 0.0
    %355 = vmatpush1.msra.mxu0 0.0
    %356 = vmatprep.subr.mxu0 0.0
    %357 = vmatpush1.msra.mxu0 0.0
    %358 = vmatprep.subr.mxu0 0.0
    %359 = vmatpush1.msra.mxu0 0.0
    %360 = vmatprep.subr.mxu0 0.0
    %361 = vmatpush1.msra.mxu0 %v253
    %362 = vmatprep.subr.mxu0 0.0
    %363 = vmatpush2.msra.mxu0 0.0
    %364 = vmatprep.subr.mxu0 0.0
    %365 = vmatpush2.msra.mxu0 0.0
    %366 = vmatprep.subr.mxu0 0.0
    %367 = vmatpush2.msra.mxu0 0.0
    %368 = vmatprep.subr.mxu0 0.0
    %369 = vmatpush2.msra.mxu0 0.0
    %370 = vmatprep.subr.mxu0 0.0
    %371 = vmatpush2.msra.mxu0 0.0
    %372 = vmatprep.subr.mxu0 0.0
    %373 = vmatpush2.msra.mxu0 0.0
    %374 = vmatprep.subr.mxu0 0.0
    %375 = vmatpush2.msra.mxu0 0.0
    %376 = vmatprep.subr.mxu0 0.0
    %377 = vmatpush2.msra.mxu0 0.0
    %378 = vmatprep.subr.mxu0 0.0
    %379 = vmatpush2.msra.mxu0 0.0
    %380 = vmatprep.subr.mxu0 0.0
    %381 = vmatpush2.msra.mxu0 0.0
    %382 = vmatprep.subr.mxu0 0.0
    %383 = vmatpush2.msra.mxu0 0.0
    %384 = vmatprep.subr.mxu0 0.0
    %385 = vmatpush2.msra.mxu0 0.0
    %386 = vmatprep.subr.mxu0 0.0
    %387 = vmatpush2.msra.mxu0 0.0
    %388 = vmatprep.subr.mxu0 0.0
    %389 = vmatpush2.msra.mxu0 0.0
    %390 = vmatprep.subr.mxu0 0.0
    %391 = vmatpush2.msra.mxu0 0.0
    %392 = vmatprep.subr.mxu0 0.0
    %393 = vmatpush2.msra.mxu0 0.0
    %394 = vmatprep.mubr.f32.mxu0 0.0
    %395 = vmatmul.mubr.f32.gmra.mxu0 %v328
    %v396 = vpop.f32.mrf.mxu0
    %v397 = vadd.f32 0.0, %v396
    %v398 = vpop.f32.mrf.mxu0
    %399 = vdwg.mxu0
    %400 = vst.msk [vmem:[#allocation8] sm:$0xff] %vm66, %v324
    %401 = vst.msk [vmem:[#allocation8 + $0x8] sm:$0xff] %vm66, %v397
    // Predicated region
    $region26: #{tpu_custom_call.1} parent=1 // pred_check
      _
    $region27: #{tpu_custom_call.1} parent=1 // pred_check_branch
      %403 = sbr.rel (0) target = $region29
    $region28: #{tpu_custom_call.1} parent=1 // pred_region
      %s405 = ssub.s32 256, 256
      %406 = vsyncadd [#allocation4], %s405
      %s407 = sshll.u32 [#allocation8], 4
      %s408 = int_to_ptr.vmem [resolvable:$true] %s407
      %413 = dma.vmem_to_hbm [thread:$0]  %s408, 256, %s3, [#allocation4], 128, 128, 8
    $region29: #{tpu_custom_call.1} parent=1 // pred_fallthru
      _
    // Predicated region
    $region30: #{tpu_custom_call.1} parent=1 // pred_check
      _
    $region31: #{tpu_custom_call.1} parent=1 // pred_check_branch
      %415 = sbr.rel (0) target = $region33
    $region32: #{tpu_custom_call.1} parent=1 // pred_region
      %s417 = ssub.s32 256, 256
      %418 = vsyncadd [#allocation10], %s417
      %s419 = sshll.u32 [#allocation9], 4
      %s420 = int_to_ptr.vmem [resolvable:$true] %s419
      %425 = dma.vmem_to_hbm [thread:$0]  %s420, 256, %s4, [#allocation10], 128, 128, 8
    $region33: #{tpu_custom_call.1} parent=1 // pred_fallthru
      _
    // Predicated region
    $region34: #{tpu_custom_call.1} parent=1 // pred_check
      _
    $region35: #{tpu_custom_call.1} parent=1 // pred_check_branch
      %427 = sbr.rel (0) target = $region37
    $region36: #{tpu_custom_call.1} parent=1 // pred_region
      %s429 = ssub.s32 256, 256
      %430 = vsyncadd [#allocation10], %s429
      %s431 = sshll.u32 [#allocation11], 4
      %s432 = int_to_ptr.vmem [resolvable:$true] %s431
      %437 = dma.vmem_to_hbm [thread:$0]  %s432, 256, %s5, [#allocation10], 128, 128, 8
    $region37: #{tpu_custom_call.1} parent=1 // pred_fallthru
      _
    // Predicated region
    $region38: #{tpu_custom_call.1} parent=1 // pred_check
      _
    $region39: #{tpu_custom_call.1} parent=1 // pred_check_branch
      %439 = sbr.rel (0) target = $region41
    $region40: #{tpu_custom_call.1} parent=1 // pred_region
      %440 = dma.done [#allocation4], 256
    $region41: #{tpu_custom_call.1} parent=1 // pred_fallthru
      _
    // Predicated region
    $region42: #{tpu_custom_call.1} parent=1 // pred_check
      _
    $region43: #{tpu_custom_call.1} parent=1 // pred_check_branch
      %442 = sbr.rel (0) target = $region45
    $region44: #{tpu_custom_call.1} parent=1 // pred_region
      %443 = dma.done [#allocation10], 256
    $region45: #{tpu_custom_call.1} parent=1 // pred_fallthru
      _
    // Predicated region
    $region46: #{tpu_custom_call.1} parent=1 // pred_check
      _
    $region47: #{tpu_custom_call.1} parent=1 // pred_check_branch
      %445 = sbr.rel (0) target = $region49
    $region48: #{tpu_custom_call.1} parent=1 // pred_region
      %446 = dma.done [#allocation10], 256
    $region49: #{tpu_custom_call.1} parent=1 // pred_fallthru
      _
    %447 = vsyncpa [#allocation3], 1
    %448 = vsyncpa [#allocation6], 1
    %449 = vsyncpa [#allocation4], 1
    %450 = vsyncpa [#allocation10], 1

</llo_original>
